<compile_context>
chip_gen: v7x
topology: tpu7x:2x2x1
jax: 0.10.0
libtpu: 0.0.40
codegen_flags: <defaults>
</compile_context>

<pallas_src>
import functools

import jax
import jax.numpy as jnp
from jax.experimental import pallas as pl
from jax.experimental.pallas import tpu as pltpu


# ---------------------------------------------------------------------------
# Pallas kernel: one (batch, row-tile) step of the attention-folded conv
# ---------------------------------------------------------------------------

def _cpe_kernel(x_ref, w_ref, b_ref, o_ref):
    """x_ref: (t, tm, L) bf16  -- full t extent of this packed row tile
       w_ref: (ks, L, L) bf16  -- attention-folded, block-diag packed Wv
       b_ref: (1, L)  f32      -- packed v-projection bias
       o_ref: (t, tm, L)       -- output, same packed layout as x
    """
    t = o_ref.shape[0]
    ks = w_ref.shape[0]
    halo = (ks - 1) // 2
    bias = b_ref[...]                              # (1, L) f32, broadcasts over rows
    for ti in range(t):                            # t == ks // b: tiny, static unroll
        acc = None
        for j in range(ks):                        # static unroll over kernel taps
            src = ti + j - halo
            if 0 <= src < t:                       # zero-pad halo taps drop out here
                d = jnp.dot(x_ref[src], w_ref[j],
                            preferred_element_type=jnp.float32)
                acc = d if acc is None else acc + d
        o_ref[ti] = (acc + bias).astype(o_ref.dtype)


# ---------------------------------------------------------------------------
# Tiling / layout helpers
# ---------------------------------------------------------------------------

def _round_up(x, m):
    return ((x + m - 1) // m) * m


def _cdiv(a, b):
    return (a + b - 1) // b


def _vmem_limit_bytes():
    """Generation-aware VMEM limit (v5e/v6e: 128 MiB physical, v7x: 64 MiB)."""
    cap = 64 * 1024 * 1024
    try:
        cap = int(getattr(pltpu.get_tpu_info(), "vmem_capacity_bytes", cap))
    except Exception:
        pass
    return int(min(cap * 3 // 4, 96 * 1024 * 1024))


def _channel_packing(c):
    """Pack r spatial positions per 128-lane row so VMEM tiles are lane-dense."""
    if c >= 128:
        c_pad = _round_up(c, 128)
        r = 1
    else:
        c_pad = 1 << max(3, (c - 1).bit_length())   # next pow2 >= 8, divides 128
        r = 128 // c_pad
    return c_pad, r, r * c_pad


def _pick_row_tile(s0, nbatch, t, ks, L, vmem_limit,
                   max_tm=2048, target_steps=8, align=16):
    """Row-tile tm (packed rows) and padded row count s_pad.

    Largest tile that fits the VMEM budget, capped so the (b, s) grid keeps
    ~target_steps steps (v7x dual-TensorCore sharding + pipelining overlap).
    """
    if s0 <= align:
        return s0, s0                               # single full-extent tile
    fixed = ks * L * L * 2 * 2 + L * 4 * 2          # weights + bias (double-buffered)
    per_row = 2 * (t * L * 2) + 2 * (t * L * 2)     # bf16 in + bf16 out, double-buffered
    tm_vmem = max(align, (int(vmem_limit * 0.7) - fixed) // per_row)
    steps_in_s = max(1, _cdiv(target_steps, max(nbatch, 1)))
    tm_split = _round_up(max(align, _cdiv(s0, steps_in_s)), align)
    tm = min(max_tm, tm_vmem, tm_split)
    tm = max(align, (tm // align) * align)
    tm = min(tm, _round_up(s0, align))
    return tm, _round_up(s0, tm)


# ---------------------------------------------------------------------------
# One CPE layer on a channels-last (b, t, w, c) activation
# ---------------------------------------------------------------------------

def _cpe_layer(x_cl, dis, p, kernel_size, stride, groups, vmem_limit):
    assert stride == 1, "CPE_Block default stride=1 is implemented"
    b, t, w, c = x_cl.shape
    ks = kernel_size
    assert c % groups == 0
    assert b * t == ks, (
        "torch broadcasting in `attn @ v` requires b*t == kernel_size")
    hd = c // groups

    # --- attention weights from the dis MLP (tiny: plain jnp, XLA fuses it) --
    d = dis[:, :t].reshape(b * t, 2).astype(jnp.float32)
    h = jnp.maximum(d @ p["w1"] + p["b1"], 0.0)
    h = jnp.maximum(h @ p["w2"] + p["b2"], 0.0)
    logits = h @ p["w3"] + p["b3"]                       # (ks, groups)
    a = jax.nn.softmax(logits, axis=0)                   # softmax over kernel taps
    a_exp = jnp.repeat(a, hd, axis=1)                    # (ks, c) per-channel weights

    # --- fold attention into the v-projection (softmax sums to 1 => one bias)
    wv = p["w_kv"][:, c:]                                # (c, c)   v-projection
    bv = p["b_kv"][:, c:].astype(jnp.float32)            # (1, c)
    w_fold = a_exp[:, None, :] * wv[None, :, :]          # (ks, c, c)

    # --- lane-dense packing: r spatial positions per 128-lane row ------------
    c_pad, r, L = _channel_packing(c)
    s0 = _cdiv(w, r)                                     # packed rows per t-slice
    tm, s_pad = _pick_row_tile(s0, b, t, ks, L, vmem_limit)
    w_fin = s_pad * r

    w_fold_p = jnp.pad(w_fold, ((0, 0), (0, c_pad - c), (0, c_pad - c)))
    eye_r = jnp.eye(r, dtype=w_fold_p.dtype)
    # block-diagonal (L, L): W_j repeated r times along the diagonal
    w_bd = jnp.einsum("pq,jio->jpiqo", eye_r, w_fold_p).reshape(ks, L, L)
    w_bd = w_bd.astype(jnp.bfloat16)
    bias_l = jnp.tile(jnp.pad(bv, ((0, 0), (0, c_pad - c))), (1, r))   # (1, L) f32

    x_p = x_cl
    if w_fin != w or c_pad != c:                         # only for awkward shapes
        x_p = jnp.pad(x_cl, ((0, 0), (0, 0), (0, w_fin - w), (0, c_pad - c)))
    x_rows = x_p.reshape(b, t, s_pad, L)                 # free row-major reshape

    out_rows = pl.pallas_call(
        _cpe_kernel,
        out_shape=jax.ShapeDtypeStruct((b, t, s_pad, L), x_cl.dtype),
        grid_spec=pltpu.PrefetchScalarGridSpec(
            num_scalar_prefetch=0,
            grid=(b, s_pad // tm),
            in_specs=[
                # activation: full t extent per row tile; t-shifted taps and the
                # zero halo are resolved statically inside the kernel
                pl.BlockSpec((None, t, tm, L), lambda bi, si: (bi, 0, si, 0)),
                # grid-invariant folded weights / bias (Pallas skips the re-DMA)
                pl.BlockSpec((ks, L, L), lambda bi, si: (0, 0, 0)),
                pl.BlockSpec((1, L), lambda bi, si: (0, 0)),
            ],
            out_specs=pl.BlockSpec((None, t, tm, L), lambda bi, si: (bi, 0, si, 0)),
        ),
        compiler_params=pltpu.CompilerParams(
            dimension_semantics=("parallel", "parallel"),
            vmem_limit_bytes=vmem_limit),
    )(x_rows, w_bd, bias_l)

    out = out_rows.reshape(b, t, w_fin, c_pad)
    if w_fin != w or c_pad != c:
        out = out[:, :, :w, :c]
    return out                                           # (b, t, w, c) channels-last


def cpe_block_forward(x, dis, params_list, kernel_size=3, stride=1, groups=4):
    residual = x
    vmem_limit = _vmem_limit_bytes()
    # one layout change for the whole block: (b,c,t,w) -> channels-last, bf16
    # carried across layers (matmul accumulation stays f32 in the kernel)
    h = jnp.transpose(x, (0, 2, 3, 1)).astype(jnp.bfloat16)
    for p in params_list:
        h = _cpe_layer(h, dis, p, kernel_size, stride, groups, vmem_limit)
    out = jnp.transpose(h, (0, 3, 1, 2)).astype(residual.dtype)
    return out + residual                                # trivial elementwise glue


# ---------------------------------------------------------------------------
# Deterministic parameter init (torch nn.Linear default: U(-1/sqrt(fan_in), ..))
# ---------------------------------------------------------------------------

def _linear_init(key, fan_in, fan_out):
    kw, kb = jax.random.split(key)
    bound = fan_in ** -0.5
    w = jax.random.uniform(kw, (fan_in, fan_out), jnp.float32, -bound, bound)
    b = jax.random.uniform(kb, (1, fan_out), jnp.float32, -bound, bound)
    return w, b


def init_cpe_params(key, channels, groups):
    k = jax.random.split(key, 4)
    w_kv, b_kv = _linear_init(k[0], channels, 2 * channels)   # kv_func
    w1, b1 = _linear_init(k[1], 2, 64)
    w2, b2 = _linear_init(k[2], 64, 128)
    w3, b3 = _linear_init(k[3], 128, groups)
    return dict(w_kv=w_kv, b_kv=b_kv, w1=w1, b1=b1, w2=w2, b2=b2, w3=w3, b3=b3)


# ---------------------------------------------------------------------------
# Pure-JAX reference (literal transcription of the PyTorch forward, eval mode)
# ---------------------------------------------------------------------------

def cpe_ref(x, dis, p, ks, groups):
    b, c, t, w = x.shape
    hd = c // groups
    pad = (ks - 1) // 2
    n_tok = b * t * w
    d = dis[:, :t]
    h = jnp.maximum(d @ p["w1"] + p["b1"], 0.0)
    h = jnp.maximum(h @ p["w2"] + p["b2"], 0.0)
    attn = h @ p["w3"] + p["b3"]                                   # (b, t, g)
    attn = attn.reshape(-1, ks, groups).transpose(0, 2, 1)[:, :, None, :]
    attn = jax.nn.softmax(attn, axis=-1)                           # (1, g, 1, ks)
    x_twc = jnp.transpose(x, (0, 2, 3, 1))
    x_pad = jnp.pad(x_twc, ((0, 0), (pad, pad), (0, 0), (0, 0)))
    kpat = jnp.stack([x_pad[:, j:j + t] for j in range(ks)], axis=3)
    kpat = kpat.reshape(n_tok, ks, c)
    kv = kpat @ p["w_kv"] + p["b_kv"]                              # (N, ks, 2c)
    kv = kv.reshape(n_tok, ks, 2, groups, hd).transpose(2, 0, 3, 1, 4)
    v = kv[1]                                                      # (N, g, ks, hd)
    o = jnp.matmul(attn, v)                                        # (N, g, 1, hd)
    o = o.transpose(0, 2, 1, 3).reshape(n_tok, 1, c)
    return o.reshape(b, t, w, c).transpose(0, 3, 1, 2)


def cpe_block_ref(x, dis, params_list, ks, groups):
    residual = x
    for p in params_list:
        x = cpe_ref(x, dis, p, ks, groups)
    return x + residual


# ---------------------------------------------------------------------------

if __name__ == "__main__":
    configs = [
        # (b, c, t, w, groups, kernel_size, cpe_layers); b*t must equal kernel_size
        (1, 16, 3, 16, 4, 3, 1),     # tiny: single-tile grid
        (1, 16, 3, 256, 4, 3, 2),    # multi-tile grid + bf16 carry across 2 layers
    ]
    base_key = jax.random.PRNGKey(0)
    for cfg_i, (b, c, t, w, groups, kernel_size, cpe_layers) in enumerate(configs):
        kx, kd, kp = jax.random.split(jax.random.fold_in(base_key, cfg_i), 3)
        x = jax.random.normal(kx, (b, c, t, w), jnp.float32)
        dis = jax.random.normal(kd, (b, 8, 2), jnp.float32)   # dis[:, :t] is used

        params_list = [init_cpe_params(k, c, groups)
                       for k in jax.random.split(kp, cpe_layers)]

        fwd = jax.jit(functools.partial(cpe_block_forward,
                                        kernel_size=kernel_size,
                                        stride=1, groups=groups))
        out = jax.block_until_ready(fwd(x, dis, params_list))

        ref = cpe_block_ref(x, dis, params_list, kernel_size, groups)
        assert out.shape == (b, c, t, w)
        # tolerance covers the bf16 operands / bf16 activation carry (f32 accum)
        assert jnp.allclose(out, ref, rtol=2e-2, atol=2e-2), (
            f"mismatch vs reference (config {cfg_i})")

    print("KERNEL_OK")
</pallas_src>

<mosaic_0001>
module attributes {stable_mosaic.version = 11 : i64} {
  func.func @_cpe_kernel(%arg0: i32, %arg1: i32, %arg2: memref<1x3x2x128xbf16, #tpu.memory_space<vmem>>, %arg3: memref<3x128x128xbf16, #tpu.memory_space<vmem>>, %arg4: memref<1x128xf32, #tpu.memory_space<vmem>>, %arg5: memref<1x3x2x128xbf16, #tpu.memory_space<vmem>>) attributes {dimension_semantics = [#tpu.dimension_semantics<parallel>, #tpu.dimension_semantics<parallel>], iteration_bounds = array<i64: 1, 1>, scalar_prefetch = 0 : i64, scratch_operands = 0 : i64, tpu.core_type = #tpu.core_type<tc>, window_params = [{transform_indices = @transform_0, window_bounds = array<i64: 1, 3, 2, 128>}, {pipeline_mode = #tpu.pipeline_mode<synchronous>, transform_indices = @transform_1, window_bounds = array<i64: 3, 128, 128>}, {pipeline_mode = #tpu.pipeline_mode<synchronous>, transform_indices = @transform_2, window_bounds = array<i64: 1, 128>}, {transform_indices = @transform_3, window_bounds = array<i64: 1, 3, 2, 128>}]} {
    %c0 = arith.constant 0 : index
    %c0_0 = arith.constant 0 : index
    %0 = vector.load %arg4[%c0, %c0_0] : memref<1x128xf32, #tpu.memory_space<vmem>>, vector<1x128xf32>
    %c0_1 = arith.constant 0 : index
    %c0_2 = arith.constant 0 : index
    %c0_3 = arith.constant 0 : index
    %c0_4 = arith.constant 0 : index
    %1 = vector.load %arg2[%c0_1, %c0_2, %c0_3, %c0_4] : memref<1x3x2x128xbf16, #tpu.memory_space<vmem>>, vector<1x1x2x128xbf16>
    %2 = vector.shape_cast %1 : vector<1x1x2x128xbf16> to vector<2x128xbf16>
    %c1 = arith.constant 1 : index
    %c0_5 = arith.constant 0 : index
    %c0_6 = arith.constant 0 : index
    %3 = vector.load %arg3[%c1, %c0_5, %c0_6] : memref<3x128x128xbf16, #tpu.memory_space<vmem>>, vector<1x128x128xbf16>
    %4 = vector.shape_cast %3 : vector<1x128x128xbf16> to vector<128x128xbf16>
    %cst = arith.constant dense<0.000000e+00> : vector<2x128xf32>
    %5 = tpu.matmul %2, %4, %cst {dimension_numbers = #tpu.dot_dimension_numbers<[1], [0], [0], [1], [0, 0, 1, 1], [], []>} : vector<2x128xbf16>, vector<128x128xbf16>, vector<2x128xf32> -> vector<2x128xf32>
    %c0_7 = arith.constant 0 : index
    %c1_8 = arith.constant 1 : index
    %c0_9 = arith.constant 0 : index
    %c0_10 = arith.constant 0 : index
    %6 = vector.load %arg2[%c0_7, %c1_8, %c0_9, %c0_10] : memref<1x3x2x128xbf16, #tpu.memory_space<vmem>>, vector<1x1x2x128xbf16>
    %7 = vector.shape_cast %6 : vector<1x1x2x128xbf16> to vector<2x128xbf16>
    %c2 = arith.constant 2 : index
    %c0_11 = arith.constant 0 : index
    %c0_12 = arith.constant 0 : index
    %8 = vector.load %arg3[%c2, %c0_11, %c0_12] : memref<3x128x128xbf16, #tpu.memory_space<vmem>>, vector<1x128x128xbf16>
    %9 = vector.shape_cast %8 : vector<1x128x128xbf16> to vector<128x128xbf16>
    %cst_13 = arith.constant dense<0.000000e+00> : vector<2x128xf32>
    %10 = tpu.matmul %7, %9, %cst_13 {dimension_numbers = #tpu.dot_dimension_numbers<[1], [0], [0], [1], [0, 0, 1, 1], [], []>} : vector<2x128xbf16>, vector<128x128xbf16>, vector<2x128xf32> -> vector<2x128xf32>
    %11 = arith.addf %5, %10 : vector<2x128xf32>
    %12 = vector.broadcast %0 : vector<1x128xf32> to vector<2x128xf32>
    %13 = arith.addf %11, %12 : vector<2x128xf32>
    %14 = arith.truncf %13 : vector<2x128xf32> to vector<2x128xbf16>
    %c0_14 = arith.constant 0 : index
    %c0_15 = arith.constant 0 : index
    %c0_16 = arith.constant 0 : index
    %c0_17 = arith.constant 0 : index
    %15 = vector.load %arg5[%c0_14, %c0_15, %c0_16, %c0_17] : memref<1x3x2x128xbf16, #tpu.memory_space<vmem>>, vector<1x1x2x128xbf16>
    %16 = vector.shape_cast %15 : vector<1x1x2x128xbf16> to vector<2x128xbf16>
    %17 = vector.shape_cast %14 : vector<2x128xbf16> to vector<1x1x2x128xbf16>
    tpu.vector_store %arg5[%c0_14, %c0_15, %c0_16, %c0_17], %17 {strides = array<i32>} : memref<1x3x2x128xbf16, #tpu.memory_space<vmem>>, vector<1x1x2x128xbf16>,
    %c0_18 = arith.constant 0 : index
    %c0_19 = arith.constant 0 : index
    %c0_20 = arith.constant 0 : index
    %c0_21 = arith.constant 0 : index
    %18 = vector.load %arg2[%c0_18, %c0_19, %c0_20, %c0_21] : memref<1x3x2x128xbf16, #tpu.memory_space<vmem>>, vector<1x1x2x128xbf16>
    %19 = vector.shape_cast %18 : vector<1x1x2x128xbf16> to vector<2x128xbf16>
    %c0_22 = arith.constant 0 : index
    %c0_23 = arith.constant 0 : index
    %c0_24 = arith.constant 0 : index
    %20 = vector.load %arg3[%c0_22, %c0_23, %c0_24] : memref<3x128x128xbf16, #tpu.memory_space<vmem>>, vector<1x128x128xbf16>
    %21 = vector.shape_cast %20 : vector<1x128x128xbf16> to vector<128x128xbf16>
    %cst_25 = arith.constant dense<0.000000e+00> : vector<2x128xf32>
    %22 = tpu.matmul %19, %21, %cst_25 {dimension_numbers = #tpu.dot_dimension_numbers<[1], [0], [0], [1], [0, 0, 1, 1], [], []>} : vector<2x128xbf16>, vector<128x128xbf16>, vector<2x128xf32> -> vector<2x128xf32>
    %c0_26 = arith.constant 0 : index
    %c1_27 = arith.constant 1 : index
    %c0_28 = arith.constant 0 : index
    %c0_29 = arith.constant 0 : index
    %23 = vector.load %arg2[%c0_26, %c1_27, %c0_28, %c0_29] : memref<1x3x2x128xbf16, #tpu.memory_space<vmem>>, vector<1x1x2x128xbf16>
    %24 = vector.shape_cast %23 : vector<1x1x2x128xbf16> to vector<2x128xbf16>
    %c1_30 = arith.constant 1 : index
    %c0_31 = arith.constant 0 : index
    %c0_32 = arith.constant 0 : index
    %25 = vector.load %arg3[%c1_30, %c0_31, %c0_32] : memref<3x128x128xbf16, #tpu.memory_space<vmem>>, vector<1x128x128xbf16>
    %26 = vector.shape_cast %25 : vector<1x128x128xbf16> to vector<128x128xbf16>
    %cst_33 = arith.constant dense<0.000000e+00> : vector<2x128xf32>
    %27 = tpu.matmul %24, %26, %cst_33 {dimension_numbers = #tpu.dot_dimension_numbers<[1], [0], [0], [1], [0, 0, 1, 1], [], []>} : vector<2x128xbf16>, vector<128x128xbf16>, vector<2x128xf32> -> vector<2x128xf32>
    %28 = arith.addf %22, %27 : vector<2x128xf32>
    %c0_34 = arith.constant 0 : index
    %c2_35 = arith.constant 2 : index
    %c0_36 = arith.constant 0 : index
    %c0_37 = arith.constant 0 : index
    %29 = vector.load %arg2[%c0_34, %c2_35, %c0_36, %c0_37] : memref<1x3x2x128xbf16, #tpu.memory_space<vmem>>, vector<1x1x2x128xbf16>
    %30 = vector.shape_cast %29 : vector<1x1x2x128xbf16> to vector<2x128xbf16>
    %c2_38 = arith.constant 2 : index
    %c0_39 = arith.constant 0 : index
    %c0_40 = arith.constant 0 : index
    %31 = vector.load %arg3[%c2_38, %c0_39, %c0_40] : memref<3x128x128xbf16, #tpu.memory_space<vmem>>, vector<1x128x128xbf16>
    %32 = vector.shape_cast %31 : vector<1x128x128xbf16> to vector<128x128xbf16>
    %cst_41 = arith.constant dense<0.000000e+00> : vector<2x128xf32>
    %33 = tpu.matmul %30, %32, %cst_41 {dimension_numbers = #tpu.dot_dimension_numbers<[1], [0], [0], [1], [0, 0, 1, 1], [], []>} : vector<2x128xbf16>, vector<128x128xbf16>, vector<2x128xf32> -> vector<2x128xf32>
    %34 = arith.addf %28, %33 : vector<2x128xf32>
    %35 = vector.broadcast %0 : vector<1x128xf32> to vector<2x128xf32>
    %36 = arith.addf %34, %35 : vector<2x128xf32>
    %37 = arith.truncf %36 : vector<2x128xf32> to vector<2x128xbf16>
    %c0_42 = arith.constant 0 : index
    %c1_43 = arith.constant 1 : index
    %c0_44 = arith.constant 0 : index
    %c0_45 = arith.constant 0 : index
    %38 = vector.load %arg5[%c0_42, %c1_43, %c0_44, %c0_45] : memref<1x3x2x128xbf16, #tpu.memory_space<vmem>>, vector<1x1x2x128xbf16>
    %39 = vector.shape_cast %38 : vector<1x1x2x128xbf16> to vector<2x128xbf16>
    %40 = vector.shape_cast %37 : vector<2x128xbf16> to vector<1x1x2x128xbf16>
    tpu.vector_store %arg5[%c0_42, %c1_43, %c0_44, %c0_45], %40 {strides = array<i32>} : memref<1x3x2x128xbf16, #tpu.memory_space<vmem>>, vector<1x1x2x128xbf16>,
    %c0_46 = arith.constant 0 : index
    %c1_47 = arith.constant 1 : index
    %c0_48 = arith.constant 0 : index
    %c0_49 = arith.constant 0 : index
    %41 = vector.load %arg2[%c0_46, %c1_47, %c0_48, %c0_49] : memref<1x3x2x128xbf16, #tpu.memory_space<vmem>>, vector<1x1x2x128xbf16>
    %42 = vector.shape_cast %41 : vector<1x1x2x128xbf16> to vector<2x128xbf16>
    %c0_50 = arith.constant 0 : index
    %c0_51 = arith.constant 0 : index
    %c0_52 = arith.constant 0 : index
    %43 = vector.load %arg3[%c0_50, %c0_51, %c0_52] : memref<3x128x128xbf16, #tpu.memory_space<vmem>>, vector<1x128x128xbf16>
    %44 = vector.shape_cast %43 : vector<1x128x128xbf16> to vector<128x128xbf16>
    %cst_53 = arith.constant dense<0.000000e+00> : vector<2x128xf32>
    %45 = tpu.matmul %42, %44, %cst_53 {dimension_numbers = #tpu.dot_dimension_numbers<[1], [0], [0], [1], [0, 0, 1, 1], [], []>} : vector<2x128xbf16>, vector<128x128xbf16>, vector<2x128xf32> -> vector<2x128xf32>
    %c0_54 = arith.constant 0 : index
    %c2_55 = arith.constant 2 : index
    %c0_56 = arith.constant 0 : index
    %c0_57 = arith.constant 0 : index
    %46 = vector.load %arg2[%c0_54, %c2_55, %c0_56, %c0_57] : memref<1x3x2x128xbf16, #tpu.memory_space<vmem>>, vector<1x1x2x128xbf16>
    %47 = vector.shape_cast %46 : vector<1x1x2x128xbf16> to vector<2x128xbf16>
    %c1_58 = arith.constant 1 : index
    %c0_59 = arith.constant 0 : index
    %c0_60 = arith.constant 0 : index
    %48 = vector.load %arg3[%c1_58, %c0_59, %c0_60] : memref<3x128x128xbf16, #tpu.memory_space<vmem>>, vector<1x128x128xbf16>
    %49 = vector.shape_cast %48 : vector<1x128x128xbf16> to vector<128x128xbf16>
    %cst_61 = arith.constant dense<0.000000e+00> : vector<2x128xf32>
    %50 = tpu.matmul %47, %49, %cst_61 {dimension_numbers = #tpu.dot_dimension_numbers<[1], [0], [0], [1], [0, 0, 1, 1], [], []>} : vector<2x128xbf16>, vector<128x128xbf16>, vector<2x128xf32> -> vector<2x128xf32>
    %51 = arith.addf %45, %50 : vector<2x128xf32>
    %52 = vector.broadcast %0 : vector<1x128xf32> to vector<2x128xf32>
    %53 = arith.addf %51, %52 : vector<2x128xf32>
    %54 = arith.truncf %53 : vector<2x128xf32> to vector<2x128xbf16>
    %c0_62 = arith.constant 0 : index
    %c2_63 = arith.constant 2 : index
    %c0_64 = arith.constant 0 : index
    %c0_65 = arith.constant 0 : index
    %55 = vector.load %arg5[%c0_62, %c2_63, %c0_64, %c0_65] : memref<1x3x2x128xbf16, #tpu.memory_space<vmem>>, vector<1x1x2x128xbf16>
    %56 = vector.shape_cast %55 : vector<1x1x2x128xbf16> to vector<2x128xbf16>
    %57 = vector.shape_cast %54 : vector<2x128xbf16> to vector<1x1x2x128xbf16>
    tpu.vector_store %arg5[%c0_62, %c2_63, %c0_64, %c0_65], %57 {strides = array<i32>} : memref<1x3x2x128xbf16, #tpu.memory_space<vmem>>, vector<1x1x2x128xbf16>,
    return
  }
  func.func @transform_0(%arg0: i32, %arg1: i32) -> (i32, i32, i32, i32) {
    %c0_i32 = arith.constant 0 : i32
    %c0_i32_0 = arith.constant 0 : i32
    %c0_i32_1 = arith.constant 0 : i32
    return %arg0, %c0_i32, %arg1, %c0_i32_0 : i32, i32, i32, i32
  }
  func.func @transform_1(%arg0: i32, %arg1: i32) -> (i32, i32, i32) {
    %c0_i32 = arith.constant 0 : i32
    %c0_i32_0 = arith.constant 0 : i32
    %c0_i32_1 = arith.constant 0 : i32
    %c0_i32_2 = arith.constant 0 : i32
    return %c0_i32, %c0_i32_0, %c0_i32_1 : i32, i32, i32
  }
  func.func @transform_2(%arg0: i32, %arg1: i32) -> (i32, i32) {
    %c0_i32 = arith.constant 0 : i32
    %c0_i32_0 = arith.constant 0 : i32
    %c0_i32_1 = arith.constant 0 : i32
    return %c0_i32, %c0_i32_0 : i32, i32
  }
  func.func @transform_3(%arg0: i32, %arg1: i32) -> (i32, i32, i32, i32) {
    %c0_i32 = arith.constant 0 : i32
    %c0_i32_0 = arith.constant 0 : i32
    %c0_i32_1 = arith.constant 0 : i32
    return %arg0, %c0_i32, %arg1, %c0_i32_0 : i32, i32, i32, i32
  }
}

</mosaic_0001>

<llo_original>
// kernel: mul.8
$region0: #{mul.8}
  %s0 = inlined_call_operand.vmem [shape: f32[3,4,4], index: 0, kind: input, shape index: {}]
  %s1 = inlined_call_operand.vmem [shape: f32[3,16], index: 1, kind: output, shape index: {}]
  $region1: #{mul.8} parent=0
    #allocation0 [shape = 'u8[4096]{0}', space=vmem, size = 0x1000, scoped, tag = 'scoped mem for output reshape']
    #allocation1 [shape = 'u8[12288]{0}', space=vmem, size = 0x3000, scoped, tag = 'scoped mem for input reshape']
    %s3 = sshllo.u32 0, 4
    %s4 = smul.addr 4, 2
    %s5 = scalar_lea.vmem %s0, %s4
    %v6 = vld [vmem:[%s5] sm:%s3]
    %s7 = scalar_lea.vmem [#allocation1], 16
    %8 = vst [vmem:[%s7] sm:%s3] %v6
    %s9 = scalar_lea.vmem %s0, 4
    %v10 = vld [vmem:[%s9] sm:%s3]
    %s11 = scalar_lea.vmem [#allocation1], 8
    %12 = vst [vmem:[%s11] sm:%s3] %v10
    %v13 = vld [vmem:[%s0] sm:%s3]
    %14 = vst [vmem:[#allocation1] sm:%s3] %v13
    %v15 = vld [vmem:[#allocation1] ss:$8 sm:$0x7]
    %vm16 = vcmask 31744
    %17 = vst.msk [vmem:[#allocation0] sm:$0x7] %vm16, %v15
    %s18 = scalar_lea.vmem [#allocation1], 3
    %v19 = vld [vmem:[%s18] ss:$8 sm:$0x7]
    %20 = vrot.lane.b32.xlu0 %v19, 12
    %v21 = vpop.permute.xlu0 %20
    %vm22 = vcmask 130144
    %23 = vst.msk [vmem:[#allocation0] sm:$0x7] %vm22, %v21
    %s24 = scalar_lea.vmem [#allocation1], 2
    %v25 = vld [vmem:[%s24] ss:$8 sm:$0x7]
    %26 = vrot.lane.b32.xlu0 %v25, 8
    %v27 = vpop.permute.xlu0 %26
    %vm28 = vcmask 97344
    %29 = vst.msk [vmem:[#allocation0] sm:$0x7] %vm28, %v27
    %s30 = scalar_lea.vmem [#allocation1], 1
    %v31 = vld [vmem:[%s30] ss:$8 sm:$0x7]
    %32 = vrot.lane.b32.xlu0 %v31, 4
    %v33 = vpop.permute.xlu0 %32
    %vm34 = vcmask 64544
    %35 = vst.msk [vmem:[#allocation0] sm:$0x7] %vm34, %v33
    %s37 = sshllo.u32 0, 4
    %v39 = vld [vmem:[#allocation0] sm:%s37]
    %s40 = sshllo.u32 0, 4
    %41 = vst [vmem:[%s1] sm:%s40] %v39

// kernel: cpe_block_forward.1
$region0: #{cpe_block_forward.1}
  #allocation0 [shape = 'u32[]', space=smem, size = 0x4, offset = 0x4, fixed_abs, tag = 'smem constant byte address 0x4 - core index']
  #allocation1 [shape = 'u32[144,128]{1,0:T(1,128)}', space=vmem, size = 0x12000, scoped, tag = 'internal scratch']
  %s0 = inlined_call_operand.vmem [shape: bf16[1,3,2,128], index: 0, kind: input, shape index: {}]
  %s1 = inlined_call_operand.vmem [shape: bf16[3,128,128], index: 1, kind: input, shape index: {}]
  %s2 = inlined_call_operand.vmem [shape: f32[1,128], index: 2, kind: input, shape index: {}]
  %s3 = inlined_call_operand.vmem [shape: bf16[1,3,2,128], index: 3, kind: output, shape index: {}]
  %s4 = sld [smem:[#allocation0]]
  $region22: #{cpe_block_forward.1} parent=0
    _
  %s6 = ssub.s32 1, %s4
  %s7 = scalar_select 0, %s6, %s4
  // Predicated region
  $region2: #{cpe_block_forward.1} parent=0 // pred_check
    _
  $region3: #{cpe_block_forward.1} parent=0 // pred_check_branch
    %9 = sbr.rel (0) target = $region5
  $region4: #{cpe_block_forward.1} parent=0 // pred_region
    _
  $region5: #{cpe_block_forward.1} parent=0 // pred_fallthru
    _
  // Predicated region
  $region6: #{cpe_block_forward.1} parent=0 // pred_check
    _
  $region7: #{cpe_block_forward.1} parent=0 // pred_check_branch
    %11 = sbr.rel (0) target = $region9
  $region8: #{cpe_block_forward.1} parent=0 // pred_region
    _
  $region9: #{cpe_block_forward.1} parent=0 // pred_fallthru
    _
  // Predicated region
  $region10: #{cpe_block_forward.1} parent=0 // pred_check
    _
  $region11: #{cpe_block_forward.1} parent=0 // pred_check_branch
    %13 = sbr.rel (0) target = $region13
  $region12: #{cpe_block_forward.1} parent=0 // pred_region
    _
  $region13: #{cpe_block_forward.1} parent=0 // pred_fallthru
    _
  %v15 = vld [vmem:[%s2] sm:$0x1]
  %v16 = vld [vmem:[%s0] sm:$0x1]
  %s17 = scalar_lea.vmem %s1, 64
  %v18 = vld [vmem:[%s17] sm:$0xf]
  %v19 = vld [vmem:[%s17 + $0x4] sm:$0xf]
  %v20 = vld [vmem:[%s17 + $0x8] sm:$0xf]
  %v21 = vld [vmem:[%s17 + $0xc] sm:$0xf]
  %v22 = vld [vmem:[%s17 + $0x10] sm:$0xf]
  %v23 = vld [vmem:[%s17 + $0x14] sm:$0xf]
  %v24 = vld [vmem:[%s17 + $0x18] sm:$0xf]
  %v25 = vld [vmem:[%s17 + $0x1c] sm:$0xf]
  %v26 = vld [vmem:[%s17 + $0x20] sm:$0xf]
  %v27 = vld [vmem:[%s17 + $0x24] sm:$0xf]
  %v28 = vld [vmem:[%s17 + $0x28] sm:$0xf]
  %v29 = vld [vmem:[%s17 + $0x2c] sm:$0xf]
  %v30 = vld [vmem:[%s17 + $0x30] sm:$0xf]
  %v31 = vld [vmem:[%s17 + $0x34] sm:$0xf]
  %v32 = vld [vmem:[%s17 + $0x38] sm:$0xf]
  %v33 = vld [vmem:[%s17 + $0x3c] sm:$0xf]
  %s34 = scalar_lea.vmem %s0, 1
  %v35 = vld [vmem:[%s34] sm:$0x1]
  %s36 = scalar_lea.vmem %s1, 128
  %v37 = vld [vmem:[%s36] sm:$0xf]
  %v38 = vld [vmem:[%s36 + $0x4] sm:$0xf]
  %v39 = vld [vmem:[%s36 + $0x8] sm:$0xf]
  %v40 = vld [vmem:[%s36 + $0xc] sm:$0xf]
  %v41 = vld [vmem:[%s36 + $0x10] sm:$0xf]
  %v42 = vld [vmem:[%s36 + $0x14] sm:$0xf]
  %v43 = vld [vmem:[%s36 + $0x18] sm:$0xf]
  %v44 = vld [vmem:[%s36 + $0x1c] sm:$0xf]
  %v45 = vld [vmem:[%s36 + $0x20] sm:$0xf]
  %v46 = vld [vmem:[%s36 + $0x24] sm:$0xf]
  %v47 = vld [vmem:[%s36 + $0x28] sm:$0xf]
  %v48 = vld [vmem:[%s36 + $0x2c] sm:$0xf]
  %v49 = vld [vmem:[%s36 + $0x30] sm:$0xf]
  %v50 = vld [vmem:[%s36 + $0x34] sm:$0xf]
  %v51 = vld [vmem:[%s36 + $0x38] sm:$0xf]
  %v52 = vld [vmem:[%s36 + $0x3c] sm:$0xf]
  %v69 = vunpack.c.l.b16 %v37
  %v70 = vunpack.c.l.b16 %v38
  %v71 = vunpack.c.l.b16 %v39
  %v72 = vunpack.c.l.b16 %v40
  %v73 = vunpack.c.l.b16 %v41
  %v74 = vunpack.c.l.b16 %v42
  %v75 = vunpack.c.l.b16 %v43
  %v76 = vunpack.c.l.b16 %v44
  %v77 = vunpack.c.l.b16 %v45
  %v78 = vunpack.c.l.b16 %v46
  %v79 = vunpack.c.l.b16 %v47
  %v80 = vunpack.c.l.b16 %v48
  %v81 = vunpack.c.l.b16 %v49
  %v82 = vunpack.c.l.b16 %v50
  %v83 = vunpack.c.l.b16 %v51
  %v84 = vunpack.c.l.b16 %v52
  %v85 = vpack.c.b16 %v70, %v69
  %v86 = vpack.c.b16 %v72, %v71
  %v87 = vpack.c.b16 %v74, %v73
  %v88 = vpack.c.b16 %v76, %v75
  %v89 = vpack.c.b16 %v78, %v77
  %v90 = vpack.c.b16 %v80, %v79
  %v91 = vpack.c.b16 %v82, %v81
  %v92 = vpack.c.b16 %v84, %v83
  %101 = vmatprep.subr.bf16.mxu0 0
  %102 = vmatpush1.bf16.msra.mxu0 %v85
  %103 = vmatprep.subr.bf16.mxu0 0
  %104 = vmatpush1.bf16.msra.mxu0 %v86
  %105 = vmatprep.subr.bf16.mxu0 0
  %106 = vmatpush1.bf16.msra.mxu0 %v87
  %107 = vmatprep.subr.bf16.mxu0 0
  %108 = vmatpush1.bf16.msra.mxu0 %v88
  %109 = vmatprep.subr.bf16.mxu0 0
  %110 = vmatpush1.bf16.msra.mxu0 %v89
  %111 = vmatprep.subr.bf16.mxu0 0
  %112 = vmatpush1.bf16.msra.mxu0 %v90
  %113 = vmatprep.subr.bf16.mxu0 0
  %114 = vmatpush1.bf16.msra.mxu0 %v91
  %115 = vmatprep.subr.bf16.mxu0 0
  %116 = vmatpush1.bf16.msra.mxu0 %v92
  %117 = vmatprep.subr.bf16.mxu0 0
  %118 = vmatpush1.bf16.msra.mxu0 0
  %119 = vmatprep.subr.bf16.mxu0 0
  %120 = vmatpush1.bf16.msra.mxu0 0
  %121 = vmatprep.subr.bf16.mxu0 0
  %122 = vmatpush1.bf16.msra.mxu0 0
  %123 = vmatprep.subr.bf16.mxu0 0
  %124 = vmatpush1.bf16.msra.mxu0 0
  %125 = vmatprep.subr.bf16.mxu0 0
  %126 = vmatpush1.bf16.msra.mxu0 0
  %127 = vmatprep.subr.bf16.mxu0 0
  %128 = vmatpush1.bf16.msra.mxu0 0
  %129 = vmatprep.subr.bf16.mxu0 0
  %130 = vmatpush1.bf16.msra.mxu0 0
  %131 = vmatprep.subr.bf16.mxu0 0
  %132 = vmatpush1.bf16.msra.mxu0 0
  %133 = vmatprep.mubr.bf16.mxu0 0
  %134 = vmatmul.mubr.bf16.gmra.mrb[0].mxu0 %v35
  %v135 = vpop.f32.mrb[0].mxu0
  %v136 = vadd.f32 0.0, %v135
  %v137 = vpop.f32.mrb[0].mxu0
  %v138 = vpop.f32.mrb[0].mxu0
  %v139 = vpop.f32.mrb[0].mxu0
  %140 = vdwg.mxu0
  %v157 = vunpack.c.l.b16 %v18
  %v158 = vunpack.c.l.b16 %v19
  %v159 = vunpack.c.l.b16 %v20
  %v160 = vunpack.c.l.b16 %v21
  %v161 = vunpack.c.l.b16 %v22
  %v162 = vunpack.c.l.b16 %v23
  %v163 = vunpack.c.l.b16 %v24
  %v164 = vunpack.c.l.b16 %v25
  %v165 = vunpack.c.l.b16 %v26
  %v166 = vunpack.c.l.b16 %v27
  %v167 = vunpack.c.l.b16 %v28
  %v168 = vunpack.c.l.b16 %v29
  %v169 = vunpack.c.l.b16 %v30
  %v170 = vunpack.c.l.b16 %v31
  %v171 = vunpack.c.l.b16 %v32
  %v172 = vunpack.c.l.b16 %v33
  %v173 = vpack.c.b16 %v158, %v157
  %v174 = vpack.c.b16 %v160, %v159
  %v175 = vpack.c.b16 %v162, %v161
  %v176 = vpack.c.b16 %v164, %v163
  %v177 = vpack.c.b16 %v166, %v165
  %v178 = vpack.c.b16 %v168, %v167
  %v179 = vpack.c.b16 %v170, %v169
  %v180 = vpack.c.b16 %v172, %v171
  %189 = vmatprep.subr.bf16.mxu0 0
  %190 = vmatpush1.bf16.msra.mxu0 %v173
  %191 = vmatprep.subr.bf16.mxu0 0
  %192 = vmatpush1.bf16.msra.mxu0 %v174
  %193 = vmatprep.subr.bf16.mxu0 0
  %194 = vmatpush1.bf16.msra.mxu0 %v175
  %195 = vmatprep.subr.bf16.mxu0 0
  %196 = vmatpush1.bf16.msra.mxu0 %v176
  %197 = vmatprep.subr.bf16.mxu0 0
  %198 = vmatpush1.bf16.msra.mxu0 %v177
  %199 = vmatprep.subr.bf16.mxu0 0
  %200 = vmatpush1.bf16.msra.mxu0 %v178
  %201 = vmatprep.subr.bf16.mxu0 0
  %202 = vmatpush1.bf16.msra.mxu0 %v179
  %203 = vmatprep.subr.bf16.mxu0 0
  %204 = vmatpush1.bf16.msra.mxu0 %v180
  %205 = vmatprep.subr.bf16.mxu0 0
  %206 = vmatpush1.bf16.msra.mxu0 0
  %207 = vmatprep.subr.bf16.mxu0 0
  %208 = vmatpush1.bf16.msra.mxu0 0
  %209 = vmatprep.subr.bf16.mxu0 0
  %210 = vmatpush1.bf16.msra.mxu0 0
  %211 = vmatprep.subr.bf16.mxu0 0
  %212 = vmatpush1.bf16.msra.mxu0 0
  %213 = vmatprep.subr.bf16.mxu0 0
  %214 = vmatpush1.bf16.msra.mxu0 0
  %215 = vmatprep.subr.bf16.mxu0 0
  %216 = vmatpush1.bf16.msra.mxu0 0
  %217 = vmatprep.subr.bf16.mxu0 0
  %218 = vmatpush1.bf16.msra.mxu0 0
  %219 = vmatprep.subr.bf16.mxu0 0
  %220 = vmatpush1.bf16.msra.mxu0 0
  %221 = vmatprep.mubr.bf16.mxu0 0
  %222 = vmatmul.mubr.bf16.gmra.mrb[0].mxu0 %v16
  %v223 = vpop.f32.mrb[0].mxu0
  %v224 = vadd.f32 %v136, %v223
  %v225 = vpop.f32.mrb[0].mxu0
  %v226 = vpop.f32.mrb[0].mxu0
  %v227 = vpop.f32.mrb[0].mxu0
  %228 = vdwg.mxu0
  %v230 = vlaneseq
  %v231 = vshrl.u32 %v230, 7
  %v232 = vsub.s32 0, %v231
  %v233 = vrot.slane %v15, %v232
  %v235 = vadd.f32 %v224, %v233
  %v236 = vpack.c.bf16 %v235, %v235
  %237 = vst [vmem:[%s3] sm:$0x1] %v236
  %v238 = vld [vmem:[%s0] sm:$0x1]
  %v239 = vld [vmem:[%s1] sm:$0xf]
  %v240 = vld [vmem:[%s1 + $0x4] sm:$0xf]
  %v241 = vld [vmem:[%s1 + $0x8] sm:$0xf]
  %v242 = vld [vmem:[%s1 + $0xc] sm:$0xf]
  %v243 = vld [vmem:[%s1 + $0x10] sm:$0xf]
  %v244 = vld [vmem:[%s1 + $0x14] sm:$0xf]
  %v245 = vld [vmem:[%s1 + $0x18] sm:$0xf]
  %v246 = vld [vmem:[%s1 + $0x1c] sm:$0xf]
  %v247 = vld [vmem:[%s1 + $0x20] sm:$0xf]
  %v248 = vld [vmem:[%s1 + $0x24] sm:$0xf]
  %v249 = vld [vmem:[%s1 + $0x28] sm:$0xf]
  %v250 = vld [vmem:[%s1 + $0x2c] sm:$0xf]
  %v251 = vld [vmem:[%s1 + $0x30] sm:$0xf]
  %v252 = vld [vmem:[%s1 + $0x34] sm:$0xf]
  %v253 = vld [vmem:[%s1 + $0x38] sm:$0xf]
  %v254 = vld [vmem:[%s1 + $0x3c] sm:$0xf]
  %v255 = vld [vmem:[%s34] sm:$0x1]
  %v256 = vld [vmem:[%s17] sm:$0xf]
  %v257 = vld [vmem:[%s17 + $0x4] sm:$0xf]
  %v258 = vld [vmem:[%s17 + $0x8] sm:$0xf]
  %v259 = vld [vmem:[%s17 + $0xc] sm:$0xf]
  %v260 = vld [vmem:[%s17 + $0x10] sm:$0xf]
  %v261 = vld [vmem:[%s17 + $0x14] sm:$0xf]
  %v262 = vld [vmem:[%s17 + $0x18] sm:$0xf]
  %v263 = vld [vmem:[%s17 + $0x1c] sm:$0xf]
  %v264 = vld [vmem:[%s17 + $0x20] sm:$0xf]
  %v265 = vld [vmem:[%s17 + $0x24] sm:$0xf]
  %v266 = vld [vmem:[%s17 + $0x28] sm:$0xf]
  %v267 = vld [vmem:[%s17 + $0x2c] sm:$0xf]
  %v268 = vld [vmem:[%s17 + $0x30] sm:$0xf]
  %v269 = vld [vmem:[%s17 + $0x34] sm:$0xf]
  %v270 = vld [vmem:[%s17 + $0x38] sm:$0xf]
  %v271 = vld [vmem:[%s17 + $0x3c] sm:$0xf]
  %v288 = vunpack.c.l.b16 %v256
  %v289 = vunpack.c.l.b16 %v257
  %v290 = vunpack.c.l.b16 %v258
  %v291 = vunpack.c.l.b16 %v259
  %v292 = vunpack.c.l.b16 %v260
  %v293 = vunpack.c.l.b16 %v261
  %v294 = vunpack.c.l.b16 %v262
  %v295 = vunpack.c.l.b16 %v263
  %v296 = vunpack.c.l.b16 %v264
  %v297 = vunpack.c.l.b16 %v265
  %v298 = vunpack.c.l.b16 %v266
  %v299 = vunpack.c.l.b16 %v267
  %v300 = vunpack.c.l.b16 %v268
  %v301 = vunpack.c.l.b16 %v269
  %v302 = vunpack.c.l.b16 %v270
  %v303 = vunpack.c.l.b16 %v271
  %v304 = vpack.c.b16 %v289, %v288
  %v305 = vpack.c.b16 %v291, %v290
  %v306 = vpack.c.b16 %v293, %v292
  %v307 = vpack.c.b16 %v295, %v294
  %v308 = vpack.c.b16 %v297, %v296
  %v309 = vpack.c.b16 %v299, %v298
  %v310 = vpack.c.b16 %v301, %v300
  %v311 = vpack.c.b16 %v303, %v302
  %320 = vmatprep.subr.bf16.mxu0 0
  %321 = vmatpush1.bf16.msra.mxu0 %v304
  %322 = vmatprep.subr.bf16.mxu0 0
  %323 = vmatpush1.bf16.msra.mxu0 %v305
  %324 = vmatprep.subr.bf16.mxu0 0
  %325 = vmatpush1.bf16.msra.mxu0 %v306
  %326 = vmatprep.subr.bf16.mxu0 0
  %327 = vmatpush1.bf16.msra.mxu0 %v307
  %328 = vmatprep.subr.bf16.mxu0 0
  %329 = vmatpush1.bf16.msra.mxu0 %v308
  %330 = vmatprep.subr.bf16.mxu0 0
  %331 = vmatpush1.bf16.msra.mxu0 %v309
  %332 = vmatprep.subr.bf16.mxu0 0
  %333 = vmatpush1.bf16.msra.mxu0 %v310
  %334 = vmatprep.subr.bf16.mxu0 0
  %335 = vmatpush1.bf16.msra.mxu0 %v311
  %336 = vmatprep.subr.bf16.mxu0 0
  %337 = vmatpush1.bf16.msra.mxu0 0
  %338 = vmatprep.subr.bf16.mxu0 0
  %339 = vmatpush1.bf16.msra.mxu0 0
  %340 = vmatprep.subr.bf16.mxu0 0
  %341 = vmatpush1.bf16.msra.mxu0 0
  %342 = vmatprep.subr.bf16.mxu0 0
  %343 = vmatpush1.bf16.msra.mxu0 0
  %344 = vmatprep.subr.bf16.mxu0 0
  %345 = vmatpush1.bf16.msra.mxu0 0
  %346 = vmatprep.subr.bf16.mxu0 0
  %347 = vmatpush1.bf16.msra.mxu0 0
  %348 = vmatprep.subr.bf16.mxu0 0
  %349 = vmatpush1.bf16.msra.mxu0 0
  %350 = vmatprep.subr.bf16.mxu0 0
  %351 = vmatpush1.bf16.msra.mxu0 0
  %352 = vmatprep.mubr.bf16.mxu0 0
  %353 = vmatmul.mubr.bf16.gmra.mrb[0].mxu0 %v255
  %v354 = vpop.f32.mrb[0].mxu0
  %v355 = vadd.f32 0.0, %v354
  %v356 = vpop.f32.mrb[0].mxu0
  %v357 = vpop.f32.mrb[0].mxu0
  %v358 = vpop.f32.mrb[0].mxu0
  %359 = vdwg.mxu0
  %v376 = vunpack.c.l.b16 %v239
  %v377 = vunpack.c.l.b16 %v240
  %v378 = vunpack.c.l.b16 %v241
  %v379 = vunpack.c.l.b16 %v242
  %v380 = vunpack.c.l.b16 %v243
  %v381 = vunpack.c.l.b16 %v244
  %v382 = vunpack.c.l.b16 %v245
  %v383 = vunpack.c.l.b16 %v246
  %v384 = vunpack.c.l.b16 %v247
  %v385 = vunpack.c.l.b16 %v248
  %v386 = vunpack.c.l.b16 %v249
  %v387 = vunpack.c.l.b16 %v250
  %v388 = vunpack.c.l.b16 %v251
  %v389 = vunpack.c.l.b16 %v252
  %v390 = vunpack.c.l.b16 %v253
  %v391 = vunpack.c.l.b16 %v254
  %v392 = vpack.c.b16 %v377, %v376
  %v393 = vpack.c.b16 %v379, %v378
  %v394 = vpack.c.b16 %v381, %v380
  %v395 = vpack.c.b16 %v383, %v382
  %v396 = vpack.c.b16 %v385, %v384
  %v397 = vpack.c.b16 %v387, %v386
  %v398 = vpack.c.b16 %v389, %v388
  %v399 = vpack.c.b16 %v391, %v390
  %408 = vmatprep.subr.bf16.mxu0 0
  %409 = vmatpush1.bf16.msra.mxu0 %v392
  %410 = vmatprep.subr.bf16.mxu0 0
  %411 = vmatpush1.bf16.msra.mxu0 %v393
  %412 = vmatprep.subr.bf16.mxu0 0
  %413 = vmatpush1.bf16.msra.mxu0 %v394
  %414 = vmatprep.subr.bf16.mxu0 0
  %415 = vmatpush1.bf16.msra.mxu0 %v395
  %416 = vmatprep.subr.bf16.mxu0 0
  %417 = vmatpush1.bf16.msra.mxu0 %v396
  %418 = vmatprep.subr.bf16.mxu0 0
  %419 = vmatpush1.bf16.msra.mxu0 %v397
  %420 = vmatprep.subr.bf16.mxu0 0
  %421 = vmatpush1.bf16.msra.mxu0 %v398
  %422 = vmatprep.subr.bf16.mxu0 0
  %423 = vmatpush1.bf16.msra.mxu0 %v399
  %424 = vmatprep.subr.bf16.mxu0 0
  %425 = vmatpush1.bf16.msra.mxu0 0
  %426 = vmatprep.subr.bf16.mxu0 0
  %427 = vmatpush1.bf16.msra.mxu0 0
  %428 = vmatprep.subr.bf16.mxu0 0
  %429 = vmatpush1.bf16.msra.mxu0 0
  %430 = vmatprep.subr.bf16.mxu0 0
  %431 = vmatpush1.bf16.msra.mxu0 0
  %432 = vmatprep.subr.bf16.mxu0 0
  %433 = vmatpush1.bf16.msra.mxu0 0
  %434 = vmatprep.subr.bf16.mxu0 0
  %435 = vmatpush1.bf16.msra.mxu0 0
  %436 = vmatprep.subr.bf16.mxu0 0
  %437 = vmatpush1.bf16.msra.mxu0 0
  %438 = vmatprep.subr.bf16.mxu0 0
  %439 = vmatpush1.bf16.msra.mxu0 0
  %440 = vmatprep.mubr.bf16.mxu0 0
  %441 = vmatmul.mubr.bf16.gmra.mrb[0].mxu0 %v238
  %v442 = vpop.f32.mrb[0].mxu0
  %v443 = vadd.f32 %v355, %v442
  %v444 = vpop.f32.mrb[0].mxu0
  %v445 = vpop.f32.mrb[0].mxu0
  %v446 = vpop.f32.mrb[0].mxu0
  %447 = vdwg.mxu0
  %s448 = scalar_lea.vmem %s0, 2
  %v449 = vld [vmem:[%s448] sm:$0x1]
  %v450 = vld [vmem:[%s36] sm:$0xf]
  %v451 = vld [vmem:[%s36 + $0x4] sm:$0xf]
  %v452 = vld [vmem:[%s36 + $0x8] sm:$0xf]
  %v453 = vld [vmem:[%s36 + $0xc] sm:$0xf]
  %v454 = vld [vmem:[%s36 + $0x10] sm:$0xf]
  %v455 = vld [vmem:[%s36 + $0x14] sm:$0xf]
  %v456 = vld [vmem:[%s36 + $0x18] sm:$0xf]
  %v457 = vld [vmem:[%s36 + $0x1c] sm:$0xf]
  %v458 = vld [vmem:[%s36 + $0x20] sm:$0xf]
  %v459 = vld [vmem:[%s36 + $0x24] sm:$0xf]
  %v460 = vld [vmem:[%s36 + $0x28] sm:$0xf]
  %v461 = vld [vmem:[%s36 + $0x2c] sm:$0xf]
  %v462 = vld [vmem:[%s36 + $0x30] sm:$0xf]
  %v463 = vld [vmem:[%s36 + $0x34] sm:$0xf]
  %v464 = vld [vmem:[%s36 + $0x38] sm:$0xf]
  %v465 = vld [vmem:[%s36 + $0x3c] sm:$0xf]
  %v482 = vunpack.c.l.b16 %v450
  %v483 = vunpack.c.l.b16 %v451
  %v484 = vunpack.c.l.b16 %v452
  %v485 = vunpack.c.l.b16 %v453
  %v486 = vunpack.c.l.b16 %v454
  %v487 = vunpack.c.l.b16 %v455
  %v488 = vunpack.c.l.b16 %v456
  %v489 = vunpack.c.l.b16 %v457
  %v490 = vunpack.c.l.b16 %v458
  %v491 = vunpack.c.l.b16 %v459
  %v492 = vunpack.c.l.b16 %v460
  %v493 = vunpack.c.l.b16 %v461
  %v494 = vunpack.c.l.b16 %v462
  %v495 = vunpack.c.l.b16 %v463
  %v496 = vunpack.c.l.b16 %v464
  %v497 = vunpack.c.l.b16 %v465
  %v498 = vpack.c.b16 %v483, %v482
  %v499 = vpack.c.b16 %v485, %v484
  %v500 = vpack.c.b16 %v487, %v486
  %v501 = vpack.c.b16 %v489, %v488
  %v502 = vpack.c.b16 %v491, %v490
  %v503 = vpack.c.b16 %v493, %v492
  %v504 = vpack.c.b16 %v495, %v494
  %v505 = vpack.c.b16 %v497, %v496
  %514 = vmatprep.subr.bf16.mxu0 0
  %515 = vmatpush1.bf16.msra.mxu0 %v498
  %516 = vmatprep.subr.bf16.mxu0 0
  %517 = vmatpush1.bf16.msra.mxu0 %v499
  %518 = vmatprep.subr.bf16.mxu0 0
  %519 = vmatpush1.bf16.msra.mxu0 %v500
  %520 = vmatprep.subr.bf16.mxu0 0
  %521 = vmatpush1.bf16.msra.mxu0 %v501
  %522 = vmatprep.subr.bf16.mxu0 0
  %523 = vmatpush1.bf16.msra.mxu0 %v502
  %524 = vmatprep.subr.bf16.mxu0 0
  %525 = vmatpush1.bf16.msra.mxu0 %v503
  %526 = vmatprep.subr.bf16.mxu0 0
  %527 = vmatpush1.bf16.msra.mxu0 %v504
  %528 = vmatprep.subr.bf16.mxu0 0
  %529 = vmatpush1.bf16.msra.mxu0 %v505
  %530 = vmatprep.subr.bf16.mxu0 0
  %531 = vmatpush1.bf16.msra.mxu0 0
  %532 = vmatprep.subr.bf16.mxu0 0
  %533 = vmatpush1.bf16.msra.mxu0 0
  %534 = vmatprep.subr.bf16.mxu0 0
  %535 = vmatpush1.bf16.msra.mxu0 0
  %536 = vmatprep.subr.bf16.mxu0 0
  %537 = vmatpush1.bf16.msra.mxu0 0
  %538 = vmatprep.subr.bf16.mxu0 0
  %539 = vmatpush1.bf16.msra.mxu0 0
  %540 = vmatprep.subr.bf16.mxu0 0
  %541 = vmatpush1.bf16.msra.mxu0 0
  %542 = vmatprep.subr.bf16.mxu0 0
  %543 = vmatpush1.bf16.msra.mxu0 0
  %544 = vmatprep.subr.bf16.mxu0 0
  %545 = vmatpush1.bf16.msra.mxu0 0
  %546 = vmatprep.mubr.bf16.mxu0 0
  %547 = vmatmul.mubr.bf16.gmra.mrb[0].mxu0 %v449
  %v548 = vpop.f32.mrb[0].mxu0
  %v549 = vadd.f32 0.0, %v548
  %v550 = vpop.f32.mrb[0].mxu0
  %v551 = vpop.f32.mrb[0].mxu0
  %v552 = vpop.f32.mrb[0].mxu0
  %553 = vdwg.mxu0
  %v554 = vadd.f32 %v443, %v549
  %v555 = vadd.f32 %v554, %v233
  %v556 = vpack.c.bf16 %v555, %v555
  %s557 = scalar_lea.vmem %s3, 1
  %558 = vst [vmem:[%s557] sm:$0x1] %v556
  %v559 = vld [vmem:[%s34] sm:$0x1]
  %v560 = vld [vmem:[%s1] sm:$0xf]
  %v561 = vld [vmem:[%s1 + $0x4] sm:$0xf]
  %v562 = vld [vmem:[%s1 + $0x8] sm:$0xf]
  %v563 = vld [vmem:[%s1 + $0xc] sm:$0xf]
  %v564 = vld [vmem:[%s1 + $0x10] sm:$0xf]
  %v565 = vld [vmem:[%s1 + $0x14] sm:$0xf]
  %v566 = vld [vmem:[%s1 + $0x18] sm:$0xf]
  %v567 = vld [vmem:[%s1 + $0x1c] sm:$0xf]
  %v568 = vld [vmem:[%s1 + $0x20] sm:$0xf]
  %v569 = vld [vmem:[%s1 + $0x24] sm:$0xf]
  %v570 = vld [vmem:[%s1 + $0x28] sm:$0xf]
  %v571 = vld [vmem:[%s1 + $0x2c] sm:$0xf]
  %v572 = vld [vmem:[%s1 + $0x30] sm:$0xf]
  %v573 = vld [vmem:[%s1 + $0x34] sm:$0xf]
  %v574 = vld [vmem:[%s1 + $0x38] sm:$0xf]
  %v575 = vld [vmem:[%s1 + $0x3c] sm:$0xf]
  %v576 = vld [vmem:[%s448] sm:$0x1]
  %v577 = vld [vmem:[%s17] sm:$0xf]
  %v578 = vld [vmem:[%s17 + $0x4] sm:$0xf]
  %v579 = vld [vmem:[%s17 + $0x8] sm:$0xf]
  %v580 = vld [vmem:[%s17 + $0xc] sm:$0xf]
  %v581 = vld [vmem:[%s17 + $0x10] sm:$0xf]
  %v582 = vld [vmem:[%s17 + $0x14] sm:$0xf]
  %v583 = vld [vmem:[%s17 + $0x18] sm:$0xf]
  %v584 = vld [vmem:[%s17 + $0x1c] sm:$0xf]
  %v585 = vld [vmem:[%s17 + $0x20] sm:$0xf]
  %v586 = vld [vmem:[%s17 + $0x24] sm:$0xf]
  %v587 = vld [vmem:[%s17 + $0x28] sm:$0xf]
  %v588 = vld [vmem:[%s17 + $0x2c] sm:$0xf]
  %v589 = vld [vmem:[%s17 + $0x30] sm:$0xf]
  %v590 = vld [vmem:[%s17 + $0x34] sm:$0xf]
  %v591 = vld [vmem:[%s17 + $0x38] sm:$0xf]
  %v592 = vld [vmem:[%s17 + $0x3c] sm:$0xf]
  %v609 = vunpack.c.l.b16 %v577
  %v610 = vunpack.c.l.b16 %v578
  %v611 = vunpack.c.l.b16 %v579
  %v612 = vunpack.c.l.b16 %v580
  %v613 = vunpack.c.l.b16 %v581
  %v614 = vunpack.c.l.b16 %v582
  %v615 = vunpack.c.l.b16 %v583
  %v616 = vunpack.c.l.b16 %v584
  %v617 = vunpack.c.l.b16 %v585
  %v618 = vunpack.c.l.b16 %v586
  %v619 = vunpack.c.l.b16 %v587
  %v620 = vunpack.c.l.b16 %v588
  %v621 = vunpack.c.l.b16 %v589
  %v622 = vunpack.c.l.b16 %v590
  %v623 = vunpack.c.l.b16 %v591
  %v624 = vunpack.c.l.b16 %v592
  %v625 = vpack.c.b16 %v610, %v609
  %v626 = vpack.c.b16 %v612, %v611
  %v627 = vpack.c.b16 %v614, %v613
  %v628 = vpack.c.b16 %v616, %v615
  %v629 = vpack.c.b16 %v618, %v617
  %v630 = vpack.c.b16 %v620, %v619
  %v631 = vpack.c.b16 %v622, %v621
  %v632 = vpack.c.b16 %v624, %v623
  %641 = vmatprep.subr.bf16.mxu0 0
  %642 = vmatpush1.bf16.msra.mxu0 %v625
  %643 = vmatprep.subr.bf16.mxu0 0
  %644 = vmatpush1.bf16.msra.mxu0 %v626
  %645 = vmatprep.subr.bf16.mxu0 0
  %646 = vmatpush1.bf16.msra.mxu0 %v627
  %647 = vmatprep.subr.bf16.mxu0 0
  %648 = vmatpush1.bf16.msra.mxu0 %v628
  %649 = vmatprep.subr.bf16.mxu0 0
  %650 = vmatpush1.bf16.msra.mxu0 %v629
  %651 = vmatprep.subr.bf16.mxu0 0
  %652 = vmatpush1.bf16.msra.mxu0 %v630
  %653 = vmatprep.subr.bf16.mxu0 0
  %654 = vmatpush1.bf16.msra.mxu0 %v631
  %655 = vmatprep.subr.bf16.mxu0 0
  %656 = vmatpush1.bf16.msra.mxu0 %v632
  %657 = vmatprep.subr.bf16.mxu0 0
  %658 = vmatpush1.bf16.msra.mxu0 0
  %659 = vmatprep.subr.bf16.mxu0 0
  %660 = vmatpush1.bf16.msra.mxu0 0
  %661 = vmatprep.subr.bf16.mxu0 0
  %662 = vmatpush1.bf16.msra.mxu0 0
  %663 = vmatprep.subr.bf16.mxu0 0
  %664 = vmatpush1.bf16.msra.mxu0 0
  %665 = vmatprep.subr.bf16.mxu0 0
  %666 = vmatpush1.bf16.msra.mxu0 0
  %667 = vmatprep.subr.bf16.mxu0 0
  %668 = vmatpush1.bf16.msra.mxu0 0
  %669 = vmatprep.subr.bf16.mxu0 0
  %670 = vmatpush1.bf16.msra.mxu0 0
  %671 = vmatprep.subr.bf16.mxu0 0
  %672 = vmatpush1.bf16.msra.mxu0 0
  %673 = vmatprep.mubr.bf16.mxu0 0
  %674 = vmatmul.mubr.bf16.gmra.mrb[0].mxu0 %v576
  %v675 = vpop.f32.mrb[0].mxu0
  %v676 = vadd.f32 0.0, %v675
  %v677 = vpop.f32.mrb[0].mxu0
  %v678 = vpop.f32.mrb[0].mxu0
  %v679 = vpop.f32.mrb[0].mxu0
  %680 = vdwg.mxu0
  %v697 = vunpack.c.l.b16 %v560
  %v698 = vunpack.c.l.b16 %v561
  %v699 = vunpack.c.l.b16 %v562
  %v700 = vunpack.c.l.b16 %v563
  %v701 = vunpack.c.l.b16 %v564
  %v702 = vunpack.c.l.b16 %v565
  %v703 = vunpack.c.l.b16 %v566
  %v704 = vunpack.c.l.b16 %v567
  %v705 = vunpack.c.l.b16 %v568
  %v706 = vunpack.c.l.b16 %v569
  %v707 = vunpack.c.l.b16 %v570
  %v708 = vunpack.c.l.b16 %v571
  %v709 = vunpack.c.l.b16 %v572
  %v710 = vunpack.c.l.b16 %v573
  %v711 = vunpack.c.l.b16 %v574
  %v712 = vunpack.c.l.b16 %v575
  %v713 = vpack.c.b16 %v698, %v697
  %v714 = vpack.c.b16 %v700, %v699
  %v715 = vpack.c.b16 %v702, %v701
  %v716 = vpack.c.b16 %v704, %v703
  %v717 = vpack.c.b16 %v706, %v705
  %v718 = vpack.c.b16 %v708, %v707
  %v719 = vpack.c.b16 %v710, %v709
  %v720 = vpack.c.b16 %v712, %v711
  %729 = vmatprep.subr.bf16.mxu0 0
  %730 = vmatpush1.bf16.msra.mxu0 %v713
  %731 = vmatprep.subr.bf16.mxu0 0
  %732 = vmatpush1.bf16.msra.mxu0 %v714
  %733 = vmatprep.subr.bf16.mxu0 0
  %734 = vmatpush1.bf16.msra.mxu0 %v715
  %735 = vmatprep.subr.bf16.mxu0 0
  %736 = vmatpush1.bf16.msra.mxu0 %v716
  %737 = vmatprep.subr.bf16.mxu0 0
  %738 = vmatpush1.bf16.msra.mxu0 %v717
  %739 = vmatprep.subr.bf16.mxu0 0
  %740 = vmatpush1.bf16.msra.mxu0 %v718
  %741 = vmatprep.subr.bf16.mxu0 0
  %742 = vmatpush1.bf16.msra.mxu0 %v719
  %743 = vmatprep.subr.bf16.mxu0 0
  %744 = vmatpush1.bf16.msra.mxu0 %v720
  %745 = vmatprep.subr.bf16.mxu0 0
  %746 = vmatpush1.bf16.msra.mxu0 0
  %747 = vmatprep.subr.bf16.mxu0 0
  %748 = vmatpush1.bf16.msra.mxu0 0
  %749 = vmatprep.subr.bf16.mxu0 0
  %750 = vmatpush1.bf16.msra.mxu0 0
  %751 = vmatprep.subr.bf16.mxu0 0
  %752 = vmatpush1.bf16.msra.mxu0 0
  %753 = vmatprep.subr.bf16.mxu0 0
  %754 = vmatpush1.bf16.msra.mxu0 0
  %755 = vmatprep.subr.bf16.mxu0 0
  %756 = vmatpush1.bf16.msra.mxu0 0
  %757 = vmatprep.subr.bf16.mxu0 0
  %758 = vmatpush1.bf16.msra.mxu0 0
  %759 = vmatprep.subr.bf16.mxu0 0
  %760 = vmatpush1.bf16.msra.mxu0 0
  %761 = vmatprep.mubr.bf16.mxu0 0
  %762 = vmatmul.mubr.bf16.gmra.mrb[0].mxu0 %v559
  %v763 = vpop.f32.mrb[0].mxu0
  %v764 = vadd.f32 %v676, %v763
  %v765 = vpop.f32.mrb[0].mxu0
  %v766 = vpop.f32.mrb[0].mxu0
  %v767 = vpop.f32.mrb[0].mxu0
  %768 = vdwg.mxu0
  %v769 = vadd.f32 %v764, %v233
  %v770 = vpack.c.bf16 %v769, %v769
  %s771 = scalar_lea.vmem %s3, 2
  %772 = vst [vmem:[%s771] sm:$0x1] %v770
  // Predicated region
  $region14: #{cpe_block_forward.1} parent=0 // pred_check
    _
  $region15: #{cpe_block_forward.1} parent=0 // pred_check_branch
    %774 = sbr.rel (0) target = $region17
  $region16: #{cpe_block_forward.1} parent=0 // pred_region
    _
  $region17: #{cpe_block_forward.1} parent=0 // pred_fallthru
    _
  // Predicated region
  $region18: #{cpe_block_forward.1} parent=0 // pred_check
    _
  $region19: #{cpe_block_forward.1} parent=0 // pred_check_branch
    %776 = sbr.rel (0) target = $region21
  $region20: #{cpe_block_forward.1} parent=0 // pred_region
    _
  $region21: #{cpe_block_forward.1} parent=0 // pred_fallthru
    _

</llo_original>
